<compile_context>
chip_gen: v5e
topology: v5e:2x2
jax: 0.10.0
libtpu: 0.0.40
codegen_flags: <defaults>
</compile_context>

<pallas_src>
import math

import jax
import jax.numpy as jnp
from jax.experimental import pallas as pl
from jax.experimental.pallas import tpu as pltpu


MASK_FILL = -1e9                       # matches torch masked_fill(mask == 0, -1e9)


# ---------------------------------------------------------------------------
# generation-aware configuration (VMEM limit + tile caps)
# ---------------------------------------------------------------------------
def _hw_config():
    """v5e/v6e have 128 MiB VMEM per core, v7x has 64 MiB per TensorCore."""
    try:
        vmem = pltpu.get_tpu_info().vmem_capacity_bytes
    except Exception:
        vmem = 64 << 20                             # conservative (v7x-like) default
    if vmem >= (100 << 20):                         # v5e / v6e
        return {
            "vmem_limit": 96 << 20,
            "row_cap": 512, "lin_k_cap": 512, "lin_n_cap": 1024,
            "q_cap": 512, "kv_cap": 256,
        }
    return {                                        # v7x
        "vmem_limit": 48 << 20,
        "row_cap": 256, "lin_k_cap": 512, "lin_n_cap": 512,
        "q_cap": 256, "kv_cap": 256,
    }


_CFG = _hw_config()


def _pick_divisor_tile(dim, cap):
    """Largest lane/sublane-friendly tile <= cap that divides dim (else full extent)."""
    if dim <= cap:
        return dim
    for t in (cap, 1024, 512, 384, 256, 128):
        if t <= cap and dim % t == 0:
            return t
    return dim  # d_model-scale dims only; sequence axes use _seq_tile (padded) instead


def _seq_tile(dim, cap):
    """(tile, padded_dim) for a sequence axis: pad rather than fall back to full extent."""
    if dim <= cap:
        return dim, dim
    for t in (cap, 512, 384, 256, 128):
        if t <= cap and dim % t == 0:
            return t, dim
    t = cap                                          # caps are multiples of 128
    return t, pl.cdiv(dim, t) * t


# ---------------------------------------------------------------------------
# Kernel 1: tiled matmul + bias (the nn.Linear layers)
# ---------------------------------------------------------------------------
def _linear_bias_kernel(x_ref, w_ref, b_ref, o_ref, acc_ref):
    kk = pl.program_id(2)

    @pl.when(kk == 0)
    def _():
        acc_ref[...] = jnp.zeros_like(acc_ref)

    # Native-dtype MXU operands; f32 accumulation via preferred_element_type.
    acc_ref[...] += jnp.dot(x_ref[...], w_ref[...], preferred_element_type=jnp.float32)

    @pl.when(kk == pl.num_programs(2) - 1)
    def _():
        o_ref[...] = (acc_ref[...] + b_ref[...].astype(jnp.float32)).astype(o_ref.dtype)


def linear_pallas(x2d, w, b):
    """y = x2d @ w + b.   x2d: (R, K);  w: (K, N);  b: (N,)."""
    R, K = x2d.shape
    Kw, N = w.shape
    assert K == Kw, (K, Kw)

    tm = R if R <= _CFG["row_cap"] else _CFG["row_cap"]
    tk = _pick_divisor_tile(K, _CFG["lin_k_cap"])
    tn = _pick_divisor_tile(N, _CFG["lin_n_cap"])

    # Pad rows to a multiple of the row tile; padded rows are sliced off afterwards.
    Rp = pl.cdiv(R, tm) * tm
    xp = x2d if Rp == R else jnp.pad(x2d, ((0, Rp - R), (0, 0)))
    b2d = b.reshape(1, N)

    out = pl.pallas_call(
        _linear_bias_kernel,
        out_shape=jax.ShapeDtypeStruct((Rp, N), x2d.dtype),
        grid_spec=pltpu.PrefetchScalarGridSpec(
            num_scalar_prefetch=0,
            grid=(Rp // tm, N // tn, K // tk),
            in_specs=[
                pl.BlockSpec((tm, tk), lambda i, j, kk: (i, kk)),
                pl.BlockSpec((tk, tn), lambda i, j, kk: (kk, j)),
                pl.BlockSpec((1, tn), lambda i, j, kk: (0, j)),
            ],
            out_specs=pl.BlockSpec((tm, tn), lambda i, j, kk: (i, j)),
            scratch_shapes=[pltpu.VMEM((tm, tn), jnp.float32)],
        ),
        compiler_params=pltpu.CompilerParams(
            dimension_semantics=("parallel", "parallel", "arbitrary"),
            vmem_limit_bytes=_CFG["vmem_limit"],
        ),
    )(xp, w, b2d)
    return out if Rp == R else out[:R]


# ---------------------------------------------------------------------------
# Kernel 2: flash-attention style fused scores / softmax / context
# ---------------------------------------------------------------------------
def _flash_body(q_ref, k_ref, v_ref, mask_ref, o_ref, m_sc, l_sc, acc_sc, scale):
    ki = pl.program_id(2)

    @pl.when(ki == 0)
    def _():
        m_sc[...] = jnp.full_like(m_sc, -jnp.inf)
        l_sc[...] = jnp.zeros_like(l_sc)
        acc_sc[...] = jnp.zeros_like(acc_sc)

    # Native-dtype QK^T on the MXU; f32 scores via preferred_element_type.
    q = q_ref[...]                                 # (tq, dK)
    k = k_ref[...]                                 # (tk, dK)
    s = jnp.dot(q, k.T, preferred_element_type=jnp.float32) * scale   # (tq, tk) f32
    if mask_ref is not None:
        # (1, tk) key-padding row or (tq, tk) full mask; broadcasts against s.
        s = jnp.where(mask_ref[...] == 0, jnp.float32(MASK_FILL), s)

    m_prev = m_sc[...]
    m_new = jnp.maximum(m_prev, s.max(axis=-1, keepdims=True))
    alpha = jnp.exp(m_prev - m_new)                # EUP
    p = jnp.exp(s - m_new)                         # EUP
    l_sc[...] = alpha * l_sc[...] + p.sum(axis=-1, keepdims=True)
    # Cast P to V's native dtype for the MXU; keep the f32 accumulator.
    acc_sc[...] = alpha * acc_sc[...] + jnp.dot(
        p.astype(v_ref.dtype), v_ref[...], preferred_element_type=jnp.float32
    )
    m_sc[...] = m_new

    @pl.when(ki == pl.num_programs(2) - 1)
    def _():
        inv_l = pl.reciprocal(l_sc[...], approx=True)   # EUP reciprocal + VPU multiply
        o_ref[...] = (acc_sc[...] * inv_l).astype(o_ref.dtype)


def flash_mha_pallas(q, k, v, mask, *, num_head):
    """q: (B*H, Sq, dK); k, v: (B*H, Sk, dK); mask: (B, 1, Sk) or (B, Sq, Sk) or None."""
    BH, Sq, dK = q.shape
    _, Sk, _ = k.shape
    B = BH // num_head
    H = num_head
    scale = 1.0 / math.sqrt(dK)

    # Prefer growing tq over tk: Q + accumulator stay resident across the kv loop, so
    # K/V HBM re-streaming scales with Sq/tq.
    tq, Sq_p = _seq_tile(Sq, _CFG["q_cap"])
    tk, Sk_p = _seq_tile(Sk, _CFG["kv_cap"])

    if Sq_p != Sq:
        q = jnp.pad(q, ((0, 0), (0, Sq_p - Sq), (0, 0)))
    if Sk_p != Sk:
        k = jnp.pad(k, ((0, 0), (0, Sk_p - Sk), (0, 0)))
        v = jnp.pad(v, ((0, 0), (0, Sk_p - Sk), (0, 0)))

    # Compact mask: keep the (B, 1, Sk) key-padding row (or the user's (B, Sq, Sk));
    # do NOT broadcast to (B, Sq, Sk). Padded key columns are masked out.
    mask_arr = None
    if mask is not None:
        mask_arr = mask.astype(jnp.float32)
        assert mask_arr.ndim == 3 and mask_arr.shape[0] == B, mask_arr.shape
        assert mask_arr.shape[1] in (1, Sq) and mask_arr.shape[2] == Sk, mask_arr.shape
    elif Sk_p != Sk:
        mask_arr = jnp.ones((B, 1, Sk), jnp.float32)
    if mask_arr is not None and (Sk_p != Sk or (mask_arr.shape[1] != 1 and Sq_p != Sq)):
        pad_q = (Sq_p - Sq) if mask_arr.shape[1] != 1 else 0
        mask_arr = jnp.pad(mask_arr, ((0, 0), (0, pad_q), (0, Sk_p - Sk)))

    grid = (BH, Sq_p // tq, Sk_p // tk)

    in_specs = [
        pl.BlockSpec((None, tq, dK), lambda b, qi, ki: (b, qi, 0)),
        pl.BlockSpec((None, tk, dK), lambda b, qi, ki: (b, ki, 0)),
        pl.BlockSpec((None, tk, dK), lambda b, qi, ki: (b, ki, 0)),
    ]
    args = [q, k, v]
    has_mask = mask_arr is not None
    if has_mask:
        if mask_arr.shape[1] == 1:
            in_specs.append(pl.BlockSpec((None, 1, tk), lambda b, qi, ki: (b // H, 0, ki)))
        else:
            in_specs.append(pl.BlockSpec((None, tq, tk), lambda b, qi, ki: (b // H, qi, ki)))
        args.append(mask_arr)

    if has_mask:
        def kernel(q_ref, k_ref, v_ref, mask_ref, o_ref, m_sc, l_sc, acc_sc):
            _flash_body(q_ref, k_ref, v_ref, mask_ref, o_ref, m_sc, l_sc, acc_sc, scale)
    else:
        def kernel(q_ref, k_ref, v_ref, o_ref, m_sc, l_sc, acc_sc):
            _flash_body(q_ref, k_ref, v_ref, None, o_ref, m_sc, l_sc, acc_sc, scale)

    out = pl.pallas_call(
        kernel,
        out_shape=jax.ShapeDtypeStruct((BH, Sq_p, dK), q.dtype),
        grid_spec=pltpu.PrefetchScalarGridSpec(
            num_scalar_prefetch=0,
            grid=grid,
            in_specs=in_specs,
            out_specs=pl.BlockSpec((None, tq, dK), lambda b, qi, ki: (b, qi, 0)),
            scratch_shapes=[
                pltpu.VMEM((tq, 1), jnp.float32),    # running max
                pltpu.VMEM((tq, 1), jnp.float32),    # running softmax denom
                pltpu.VMEM((tq, dK), jnp.float32),   # f32 context accumulator
            ],
        ),
        compiler_params=pltpu.CompilerParams(
            dimension_semantics=("parallel", "parallel", "arbitrary"),
            vmem_limit_bytes=_CFG["vmem_limit"],
        ),
    )(*args)
    return out if Sq_p == Sq else out[:, :Sq]


# ---------------------------------------------------------------------------
# Multi_Head_Attention.forward (eval mode)
# ---------------------------------------------------------------------------
def multi_head_attention_forward(query, key, value, params, mask=None):
    B, Sq, D = query.shape
    H = params["num_head"]
    assert D % H == 0
    dK = D // H

    def split_heads(y2d, S):
        # TODO(synk): this (B,S,H,dK)->(B,H,S,dK) relayout (and its inverse below) still
        # materializes an HBM copy; folding head selection into the flash kernel's
        # index_map / packing heads needs dK to be a multiple of 128, which small d_K
        # here does not satisfy, so it is deferred.
        y = y2d.reshape(B, S, H, dK)
        return jnp.transpose(y, (0, 2, 1, 3)).reshape(B * H, S, dK)

    if (query is key) and (key is value):
        # Fused QKV projection for self-attention: stream the input from HBM once.
        w_qkv = jnp.concatenate([params["w_q"], params["w_k"], params["w_v"]], axis=1)
        b_qkv = jnp.concatenate([params["b_q"], params["b_k"], params["b_v"]], axis=0)
        y = linear_pallas(query.reshape(B * Sq, D), w_qkv, b_qkv)        # (B*Sq, 3D)
        q = split_heads(y[:, :D], Sq)
        k = split_heads(y[:, D:2 * D], Sq)
        v = split_heads(y[:, 2 * D:], Sq)
    else:
        Sk = key.shape[1]
        Sv = value.shape[1]
        q = split_heads(linear_pallas(query.reshape(B * Sq, D), params["w_q"], params["b_q"]), Sq)
        k = split_heads(linear_pallas(key.reshape(B * Sk, D), params["w_k"], params["b_k"]), Sk)
        v = split_heads(linear_pallas(value.reshape(B * Sv, D), params["w_v"], params["b_v"]), Sv)

    # TODO(synk): nn.Dropout(p=0.1) on the attention probabilities is omitted
    # (inference / eval-mode identity); the full probability tensor (self.attention in
    # the reference) is never materialized by the flash kernel.
    ctx = flash_mha_pallas(q, k, v, mask, num_head=H)

    x = ctx.reshape(B, H, Sq, dK)
    x = jnp.transpose(x, (0, 2, 1, 3)).reshape(B * Sq, D)
    out = linear_pallas(x, params["w_o"], params["b_o"])
    return out.reshape(B, Sq, D)


# ---------------------------------------------------------------------------
# pure-JAX reference (same math, for correctness check)
# ---------------------------------------------------------------------------
def ref_mha(query, key, value, params, mask=None):
    B, Sq, D = query.shape
    Sk = key.shape[1]
    H = params["num_head"]
    dK = D // H

    def lin(x, w, b):
        return x @ w + b

    def split(x):
        return jnp.transpose(x.reshape(B, -1, H, dK), (0, 2, 1, 3))

    q = split(lin(query, params["w_q"], params["b_q"]))
    k = split(lin(key, params["w_k"], params["b_k"]))
    v = split(lin(value, params["w_v"], params["b_v"]))

    scores = jnp.einsum("bhqd,bhkd->bhqk", q, k) / math.sqrt(dK)
    if mask is not None:
        m = jnp.broadcast_to(mask.astype(jnp.float32), (B, Sq, Sk))[:, None, :, :]
        scores = jnp.where(m == 0, MASK_FILL, scores)
    p = jax.nn.softmax(scores, axis=-1)
    x = jnp.einsum("bhqk,bhkd->bhqd", p, v)
    x = jnp.transpose(x, (0, 2, 1, 3)).reshape(B, Sq, D)
    return lin(x, params["w_o"], params["b_o"])


if __name__ == "__main__":
    # Small shapes consistent with the module: d_model % num_head == 0
    B, S, D, H = 2, 8, 32, 4

    root = jax.random.PRNGKey(0)
    keys = jax.random.split(root, 12)

    def init_linear(kw, kb, fan_in, fan_out):
        bound = 1.0 / math.sqrt(fan_in)          # PyTorch nn.Linear default init range
        w = jax.random.uniform(kw, (fan_in, fan_out), jnp.float32, -bound, bound)
        b = jax.random.uniform(kb, (fan_out,), jnp.float32, -bound, bound)
        return w, b

    w_q, b_q = init_linear(keys[0], keys[1], D, D)
    w_k, b_k = init_linear(keys[2], keys[3], D, D)
    w_v, b_v = init_linear(keys[4], keys[5], D, D)
    w_o, b_o = init_linear(keys[6], keys[7], D, D)

    params = {
        "num_head": H,
        "w_q": w_q, "b_q": b_q,
        "w_k": w_k, "b_k": b_k,
        "w_v": w_v, "b_v": b_v,
        "w_o": w_o, "b_o": b_o,
    }

    query = jax.random.normal(keys[8], (B, S, D), dtype=jnp.float32)
    key_in = jax.random.normal(keys[9], (B, S, D), dtype=jnp.float32)
    value_in = jax.random.normal(keys[10], (B, S, D), dtype=jnp.float32)

    # key-padding mask: batch 1 has its last 3 key positions masked out
    mask = jnp.ones((B, 1, S), dtype=jnp.float32)
    mask = mask.at[1, 0, S - 3:].set(0.0)

    # distinct q/k/v (separate projection kernels), with and without mask
    out_masked = multi_head_attention_forward(query, key_in, value_in, params, mask=mask)
    out_nomask = multi_head_attention_forward(query, key_in, value_in, params, mask=None)
    # self-attention (query is key is value) exercises the fused-QKV projection path
    out_self = multi_head_attention_forward(query, query, query, params, mask=mask)
    out_masked, out_nomask, out_self = jax.block_until_ready(
        (out_masked, out_nomask, out_self)
    )

    ref_masked = ref_mha(query, key_in, value_in, params, mask=mask)
    ref_nomask = ref_mha(query, key_in, value_in, params, mask=None)
    ref_self = ref_mha(query, query, query, params, mask=mask)

    assert jnp.allclose(out_masked, ref_masked, atol=2e-3, rtol=2e-3), float(
        jnp.max(jnp.abs(out_masked - ref_masked))
    )
    assert jnp.allclose(out_nomask, ref_nomask, atol=2e-3, rtol=2e-3), float(
        jnp.max(jnp.abs(out_nomask - ref_nomask))
    )
    assert jnp.allclose(out_self, ref_self, atol=2e-3, rtol=2e-3), float(
        jnp.max(jnp.abs(out_self - ref_self))
    )

    print("KERNEL_OK")
</pallas_src>

<mosaic_0001>
module attributes {stable_mosaic.version = 11 : i64} {
  func.func @_linear_bias_kernel(%arg0: i32, %arg1: i32, %arg2: i32, %arg3: memref<16x32xf32, #tpu.memory_space<vmem>>, %arg4: memref<32x32xf32, #tpu.memory_space<vmem>>, %arg5: memref<1x32xf32, #tpu.memory_space<vmem>>, %arg6: memref<16x32xf32, #tpu.memory_space<vmem>>, %arg7: memref<16x32xf32, #tpu.memory_space<vmem>>) attributes {dimension_semantics = [#tpu.dimension_semantics<parallel>, #tpu.dimension_semantics<parallel>, #tpu.dimension_semantics<arbitrary>], iteration_bounds = array<i64: 1, 1, 1>, scalar_prefetch = 0 : i64, scratch_operands = 1 : i64, tpu.core_type = #tpu.core_type<tc>, window_params = [{transform_indices = @transform_0, window_bounds = array<i64: 16, 32>}, {transform_indices = @transform_1, window_bounds = array<i64: 32, 32>}, {transform_indices = @transform_2, window_bounds = array<i64: 1, 32>}, {transform_indices = @transform_3, window_bounds = array<i64: 16, 32>}]} {
    %c0_i32 = arith.constant 0 : i32
    %0 = arith.cmpi eq, %arg2, %c0_i32 : i32
    %1 = arith.extui %0 : i1 to i32
    %c0_i32_0 = arith.constant 0 : i32
    %2 = arith.cmpi ne, %1, %c0_i32_0 : i32
    scf.if %2 {
      %cst_10 = arith.constant 0.000000e+00 : f32
      %12 = vector.broadcast %cst_10 : f32 to vector<16x32xf32>
      %c0_11 = arith.constant 0 : index
      %c0_12 = arith.constant 0 : index
      %13 = vector.load %arg7[%c0_11, %c0_12] : memref<16x32xf32, #tpu.memory_space<vmem>>, vector<16x32xf32>
      tpu.vector_store %arg7[%c0_11, %c0_12], %12 {strides = array<i32>} : memref<16x32xf32, #tpu.memory_space<vmem>>, vector<16x32xf32>,
    } else {
    }
    %c0 = arith.constant 0 : index
    %c0_1 = arith.constant 0 : index
    %3 = vector.load %arg7[%c0, %c0_1] : memref<16x32xf32, #tpu.memory_space<vmem>>, vector<16x32xf32>
    %c0_2 = arith.constant 0 : index
    %c0_3 = arith.constant 0 : index
    %4 = vector.load %arg3[%c0_2, %c0_3] : memref<16x32xf32, #tpu.memory_space<vmem>>, vector<16x32xf32>
    %c0_4 = arith.constant 0 : index
    %c0_5 = arith.constant 0 : index
    %5 = vector.load %arg4[%c0_4, %c0_5] : memref<32x32xf32, #tpu.memory_space<vmem>>, vector<32x32xf32>
    %cst = arith.constant dense<0.000000e+00> : vector<16x32xf32>
    %6 = tpu.matmul %4, %5, %cst {dimension_numbers = #tpu.dot_dimension_numbers<[1], [0], [0], [1], [0, 0, 1, 1], [], []>} : vector<16x32xf32>, vector<32x32xf32>, vector<16x32xf32> -> vector<16x32xf32>
    %7 = arith.addf %3, %6 : vector<16x32xf32>
    %c0_6 = arith.constant 0 : index
    %c0_7 = arith.constant 0 : index
    %8 = vector.load %arg7[%c0_6, %c0_7] : memref<16x32xf32, #tpu.memory_space<vmem>>, vector<16x32xf32>
    tpu.vector_store %arg7[%c0_6, %c0_7], %7 {strides = array<i32>} : memref<16x32xf32, #tpu.memory_space<vmem>>, vector<16x32xf32>,
    %c0_i32_8 = arith.constant 0 : i32
    %9 = arith.cmpi eq, %arg2, %c0_i32_8 : i32
    %10 = arith.extui %9 : i1 to i32
    %c0_i32_9 = arith.constant 0 : i32
    %11 = arith.cmpi ne, %10, %c0_i32_9 : i32
    scf.if %11 {
      %c0_10 = arith.constant 0 : index
      %c0_11 = arith.constant 0 : index
      %12 = vector.load %arg7[%c0_10, %c0_11] : memref<16x32xf32, #tpu.memory_space<vmem>>, vector<16x32xf32>
      %c0_12 = arith.constant 0 : index
      %c0_13 = arith.constant 0 : index
      %13 = vector.load %arg5[%c0_12, %c0_13] : memref<1x32xf32, #tpu.memory_space<vmem>>, vector<1x32xf32>
      %14 = vector.broadcast %13 : vector<1x32xf32> to vector<16x32xf32>
      %15 = arith.addf %12, %14 : vector<16x32xf32>
      %c0_14 = arith.constant 0 : index
      %c0_15 = arith.constant 0 : index
      %16 = vector.load %arg6[%c0_14, %c0_15] : memref<16x32xf32, #tpu.memory_space<vmem>>, vector<16x32xf32>
      tpu.vector_store %arg6[%c0_14, %c0_15], %15 {strides = array<i32>} : memref<16x32xf32, #tpu.memory_space<vmem>>, vector<16x32xf32>,
    } else {
    }
    return
  }
  func.func @transform_0(%arg0: i32, %arg1: i32, %arg2: i32) -> (i32, i32) {
    %c0_i32 = arith.constant 0 : i32
    return %arg0, %arg2 : i32, i32
  }
  func.func @transform_1(%arg0: i32, %arg1: i32, %arg2: i32) -> (i32, i32) {
    %c0_i32 = arith.constant 0 : i32
    return %arg2, %arg1 : i32, i32
  }
  func.func @transform_2(%arg0: i32, %arg1: i32, %arg2: i32) -> (i32, i32) {
    %c0_i32 = arith.constant 0 : i32
    %c0_i32_0 = arith.constant 0 : i32
    return %c0_i32, %arg1 : i32, i32
  }
  func.func @transform_3(%arg0: i32, %arg1: i32, %arg2: i32) -> (i32, i32) {
    %c0_i32 = arith.constant 0 : i32
    return %arg0, %arg1 : i32, i32
  }
}

</mosaic_0001>

<llo_original>
// kernel: tpu_custom_call.1
$region0: #{tpu_custom_call.1}
  #allocation0 [shape = 'u32[]', space=smem, size = 0x4, offset = 0x4, fixed_abs, tag = 'smem constant byte address 0x4 - core index']
  #allocation1 [shape = 'u32[72,128]{1,0:T(1,128)}', space=vmem, size = 0x9000, scoped, tag = 'internal scratch']
  #allocation2 [shape = 'f32[16,32]{1,0:T(8,128)}', space=vmem, size = 0x2000, scoped, tag = 'scratch operand']
  %s0 = inlined_call_operand.hbm [shape: f32[16,32], index: 0, kind: input, shape index: {}]
  %s1 = inlined_call_operand.hbm [shape: f32[32,32], index: 1, kind: input, shape index: {}]
  %s2 = inlined_call_operand.vmem [shape: f32[1,32], index: 2, kind: input, shape index: {}]
  %s3 = inlined_call_operand.hbm [shape: f32[16,32], index: 3, kind: output, shape index: {}]
  %s4 = sld [smem:[#allocation0]]
  $region38: #{tpu_custom_call.1} parent=0
    _
  %s6 = ssub.s32 1, %s4
  %s7 = scalar_select 0, %s6, %s4
  $region1: #{tpu_custom_call.1} parent=0
    #allocation3 [shape = 'u8[8192]{0}', space=vmem, size = 0x2000, scoped, tag = 'input window, operand 0, single buffered']
    #allocation4 [shape = 's32[1]{0}', space=sflag, size = 0x4, scoped, tag = 'scoped memory for tpu_custom_call.1']
    #allocation5 [shape = 's32[1]{0}', space=sflag, size = 0x4, scoped, tag = 'scoped memory for tpu_custom_call.1']
    #allocation6 [shape = 'u8[16384]{0}', space=vmem, size = 0x4000, scoped, tag = 'input window, operand 1, single buffered']
    #allocation7 [shape = 's32[1]{0}', space=sflag, size = 0x4, scoped, tag = 'scoped memory for tpu_custom_call.1']
    #allocation8 [shape = 'u8[8192]{0}', space=vmem, size = 0x2000, scoped, tag = 'output window, operand 0, single buffered']
    %8 = vsyncpa [#allocation4], 0
    %9 = vsyncpa [#allocation7], 0
    %10 = vsyncpa [#allocation5], 0
    // Predicated region
    $region2: #{tpu_custom_call.1} parent=1 // pred_check
      _
    $region3: #{tpu_custom_call.1} parent=1 // pred_check_branch
      %12 = sbr.rel (0) target = $region5
    $region4: #{tpu_custom_call.1} parent=1 // pred_region
      %14 = vsyncadd [#allocation4], 0
      %s15 = sshll.u32 %s0, 4
      %s16 = int_to_ptr.hbm [resolvable:$true] %s15
      %s17 = sshll.u32 [#allocation3], 4
      %s18 = int_to_ptr.vmem [resolvable:$true] %s17
      %23 = dma.hbm_to_vmem [thread:$0]  %s16, 256, %s18, [#allocation4], 128, 128, 8
    $region5: #{tpu_custom_call.1} parent=1 // pred_fallthru
      _
    // Predicated region
    $region6: #{tpu_custom_call.1} parent=1 // pred_check
      _
    $region7: #{tpu_custom_call.1} parent=1 // pred_check_branch
      %25 = sbr.rel (0) target = $region9
    $region8: #{tpu_custom_call.1} parent=1 // pred_region
      %27 = vsyncadd [#allocation7], 0
      %s28 = sshll.u32 %s1, 4
      %s29 = int_to_ptr.hbm [resolvable:$true] %s28
      %s30 = sshll.u32 [#allocation6], 4
      %s31 = int_to_ptr.vmem [resolvable:$true] %s30
      %36 = dma.hbm_to_vmem [thread:$0]  %s29, 512, %s31, [#allocation7], 128, 128, 8
    $region9: #{tpu_custom_call.1} parent=1 // pred_fallthru
      _
    // Predicated region
    $region10: #{tpu_custom_call.1} parent=1 // pred_check
      _
    $region11: #{tpu_custom_call.1} parent=1 // pred_check_branch
      %38 = sbr.rel (0) target = $region13
    $region12: #{tpu_custom_call.1} parent=1 // pred_region
      _
    $region13: #{tpu_custom_call.1} parent=1 // pred_fallthru
      _
    // Predicated region
    $region14: #{tpu_custom_call.1} parent=1 // pred_check
      _
    $region15: #{tpu_custom_call.1} parent=1 // pred_check_branch
      %40 = sbr.rel (0) target = $region17
    $region16: #{tpu_custom_call.1} parent=1 // pred_region
      %42 = dma.done [#allocation4], 256
    $region17: #{tpu_custom_call.1} parent=1 // pred_fallthru
      _
    // Predicated region
    $region18: #{tpu_custom_call.1} parent=1 // pred_check
      _
    $region19: #{tpu_custom_call.1} parent=1 // pred_check_branch
      %44 = sbr.rel (0) target = $region21
    $region20: #{tpu_custom_call.1} parent=1 // pred_region
      %46 = dma.done [#allocation7], 512
    $region21: #{tpu_custom_call.1} parent=1 // pred_fallthru
      _
    %p47 = scmp.eq.s32.totalorder 0, 0
    // Predicated region
    $region22: #{tpu_custom_call.1} parent=1 // pred_check
      %p48 = pneg %p47
    $region23: #{tpu_custom_call.1} parent=1 // pred_check_branch
      %50 = sbr.rel (%p48) target = $region25
    $region24: #{tpu_custom_call.1} parent=1 // pred_region
      %vm51 = vcmask 261120
      %52 = vst.msk [vmem:[#allocation2] sm:$0xff] %vm51, 0.0
      %53 = vst.msk [vmem:[#allocation2 + $0x8] sm:$0xff] %vm51, 0.0
    $region25: #{tpu_custom_call.1} parent=1 // pred_fallthru
      _
    %v54 = vld [vmem:[#allocation2] sm:$0xff]
    %v55 = vld [vmem:[#allocation2 + $0x8] sm:$0xff]
    %v56 = vld [vmem:[#allocation3] sm:$0xff]
    %v57 = vld [vmem:[#allocation3 + $0x8] sm:$0xff]
    %v58 = vld [vmem:[#allocation6] sm:$0xff]
    %v59 = vld [vmem:[#allocation6 + $0x8] sm:$0xff]
    %v60 = vld [vmem:[#allocation6 + $0x10] sm:$0xff]
    %v61 = vld [vmem:[#allocation6 + $0x18] sm:$0xff]
    %vm62 = vcmask 261120
    %v64 = vsel %vm62, %v56, 0
    %v67 = vsel %vm62, %v57, 0
    %69 = vmatpush.msra.mxu0 0.0
    %70 = vmatpush.msra.mxu0 0.0
    %71 = vmatpush.msra.mxu0 0.0
    %72 = vmatpush.msra.mxu0 0.0
    %73 = vmatpush.msra.mxu0 0.0
    %74 = vmatpush.msra.mxu0 0.0
    %75 = vmatpush.msra.mxu0 0.0
    %76 = vmatpush.msra.mxu0 0.0
    %77 = vmatpush.msra.mxu0 0.0
    %78 = vmatpush.msra.mxu0 0.0
    %79 = vmatpush.msra.mxu0 0.0
    %80 = vmatpush.msra.mxu0 0.0
    %81 = vmatpush.msra.mxu0 %v61
    %82 = vmatpush.msra.mxu0 %v60
    %83 = vmatpush.msra.mxu0 %v59
    %84 = vmatpush.msra.mxu0 %v58
    %85 = vmatmul.f32.gmra.mxu0 %v64
    %v86 = vpop.f32.mrf.mxu0
    %v87 = vadd.f32 0.0, %v86
    %88 = vmatmul.f32.gmra.mxu0 %v67
    %v89 = vpop.f32.mrf.mxu0
    %v90 = vadd.f32 0.0, %v89
    %91 = vdwg.mxu0
    %v92 = vadd.f32 %v54, %v87
    %v93 = vadd.f32 %v55, %v90
    %94 = vst.msk [vmem:[#allocation2] sm:$0xff] %vm62, %v92
    %95 = vst.msk [vmem:[#allocation2 + $0x8] sm:$0xff] %vm62, %v93
    // Predicated region
    $region26: #{tpu_custom_call.1} parent=1 // pred_check
      %p96 = pneg %p47
    $region27: #{tpu_custom_call.1} parent=1 // pred_check_branch
      %98 = sbr.rel (%p96) target = $region29
    $region28: #{tpu_custom_call.1} parent=1 // pred_region
      %v99 = vld [vmem:[#allocation2] sm:$0xff]
      %v100 = vld [vmem:[#allocation2 + $0x8] sm:$0xff]
      %v101 = vld [vmem:[%s2] sm:$0x1]
      %v103 = vperm.slane %v101, 0
      %v105 = vadd.f32 %v99, %v103
      %v106 = vadd.f32 %v100, %v103
      %107 = vst.msk [vmem:[#allocation8] sm:$0xff] %vm62, %v105
      %108 = vst.msk [vmem:[#allocation8 + $0x8] sm:$0xff] %vm62, %v106
    $region29: #{tpu_custom_call.1} parent=1 // pred_fallthru
      _
    // Predicated region
    $region30: #{tpu_custom_call.1} parent=1 // pred_check
      _
    $region31: #{tpu_custom_call.1} parent=1 // pred_check_branch
      %110 = sbr.rel (0) target = $region33
    $region32: #{tpu_custom_call.1} parent=1 // pred_region
      %112 = vsyncadd [#allocation5], 0
      %s113 = sshll.u32 [#allocation8], 4
      %s114 = int_to_ptr.vmem [resolvable:$true] %s113
      %s115 = sshll.u32 %s3, 4
      %s116 = int_to_ptr.hbm [resolvable:$true] %s115
      %121 = dma.vmem_to_hbm [thread:$0]  %s114, 256, %s116, [#allocation5], 128, 128, 8
    $region33: #{tpu_custom_call.1} parent=1 // pred_fallthru
      _
    // Predicated region
    $region34: #{tpu_custom_call.1} parent=1 // pred_check
      _
    $region35: #{tpu_custom_call.1} parent=1 // pred_check_branch
      %123 = sbr.rel (0) target = $region37
    $region36: #{tpu_custom_call.1} parent=1 // pred_region
      %125 = dma.done [#allocation5], 256
    $region37: #{tpu_custom_call.1} parent=1 // pred_fallthru
      _
    %126 = vsyncpa [#allocation4], 1
    %127 = vsyncpa [#allocation7], 1
    %128 = vsyncpa [#allocation5], 1

</llo_original>
